<compile_context>
chip_gen: v5e
topology: v5e:2x2
jax: 0.10.0
libtpu: 0.0.40
codegen_flags: <defaults>
</compile_context>

<pallas_src>
import jax
import jax.numpy as jnp
from jax.experimental import pallas as pl
from jax.experimental.pallas import tpu as pltpu

INPUT_SIZE = 784
HIDDEN = 256
N_CLASSES = 10
N_CLASSES_PAD = 128        # lane-dense output (pad 10 -> 128, slice in the wrapper)
MAX_TILE_B = 512           # sized against v7x 64 MiB VMEM; multiple of 16 (bf16 sublanes)


def _round_up(x, m):
    return (x + m - 1) // m * m


def _mlp_kernel(x_ref, w1_ref, b1_ref, w2_ref, b2_ref, out_ref):
    # x_ref:  (TILE_B, 784) bf16    w1_ref: (784, 256) bf16   b1_ref: (1, 256) f32
    # w2_ref: (256, 128)   bf16     b2_ref: (1, 128)   f32    out_ref: (TILE_B, 128) f32
    h = jnp.dot(x_ref[...], w1_ref[...], preferred_element_type=jnp.float32)
    h = jnp.maximum(h + b1_ref[...], 0.0)            # bias + ReLU in the f32 accumulator
    logits = jnp.dot(h.astype(w2_ref.dtype), w2_ref[...],
                     preferred_element_type=jnp.float32)
    out_ref[...] = logits + b2_ref[...]


def mlp_forward(x, w1, b1, w2, b2):
    """Forward pass matching MLP.forward: x.view(-1, 784) -> fc -> relu -> fc."""
    x2d = x.reshape(-1, INPUT_SIZE)
    batch = x2d.shape[0]

    # Tile the batch; pad rows so the grid divides evenly (padded rows are zeros and
    # their outputs are sliced off below).
    tile_b = min(MAX_TILE_B, _round_up(batch, 16))
    padded_b = _round_up(batch, tile_b)
    x_bf16 = jnp.zeros((padded_b, INPUT_SIZE), jnp.bfloat16).at[:batch].set(
        x2d.astype(jnp.bfloat16))

    # bf16 weights (MXU-native), f32 biases; pad class dim to 128 lanes (zeros).
    w1_bf16 = w1.astype(jnp.bfloat16)
    w2_pad = jnp.zeros((HIDDEN, N_CLASSES_PAD), jnp.bfloat16).at[:, :N_CLASSES].set(
        w2.astype(jnp.bfloat16))
    b1_f32 = b1.astype(jnp.float32)
    b2_pad = jnp.zeros((1, N_CLASSES_PAD), jnp.float32).at[:, :N_CLASSES].set(
        b2.astype(jnp.float32))

    grid = (padded_b // tile_b,)
    out = pl.pallas_call(
        _mlp_kernel,
        out_shape=jax.ShapeDtypeStruct((padded_b, N_CLASSES_PAD), jnp.float32),
        grid=grid,
        in_specs=[
            pl.BlockSpec((tile_b, INPUT_SIZE), lambda i: (i, 0)),      # x tiles (pipelined)
            pl.BlockSpec((INPUT_SIZE, HIDDEN), lambda i: (0, 0)),      # w1 (VMEM-resident)
            pl.BlockSpec((1, HIDDEN), lambda i: (0, 0)),               # b1 (VMEM-resident)
            pl.BlockSpec((HIDDEN, N_CLASSES_PAD), lambda i: (0, 0)),   # w2 (VMEM-resident)
            pl.BlockSpec((1, N_CLASSES_PAD), lambda i: (0, 0)),        # b2 (VMEM-resident)
        ],
        out_specs=pl.BlockSpec((tile_b, N_CLASSES_PAD), lambda i: (i, 0)),
        compiler_params=pltpu.CompilerParams(
            dimension_semantics=("parallel",)),
    )(x_bf16, w1_bf16, b1_f32, w2_pad, b2_pad)

    return out[:batch, :N_CLASSES]


def init_params(key):
    """Deterministic params, same shapes as nn.Linear(784,256) / nn.Linear(256,10).

    PyTorch stores weights as (out, in); we keep them as (in, out) for the kernel.
    """
    k1, k2, k3, k4 = jax.random.split(key, 4)
    bound1 = 1.0 / (INPUT_SIZE ** 0.5)
    bound2 = 1.0 / (HIDDEN ** 0.5)
    w1 = jax.random.uniform(k1, (INPUT_SIZE, HIDDEN), jnp.float32, -bound1, bound1)
    b1 = jax.random.uniform(k2, (1, HIDDEN), jnp.float32, -bound1, bound1)
    w2 = jax.random.uniform(k3, (HIDDEN, N_CLASSES), jnp.float32, -bound2, bound2)
    b2 = jax.random.uniform(k4, (1, N_CLASSES), jnp.float32, -bound2, bound2)
    return w1, b1, w2, b2


if __name__ == "__main__":
    key = jax.random.PRNGKey(0)
    kx, kp = jax.random.split(key)

    # MNIST-like input, NCHW: (batch=2, channels=1, 28, 28) -> flattened to 784.
    x = jax.random.normal(kx, (2, 1, 28, 28), dtype=jnp.float32)
    w1, b1, w2, b2 = init_params(kp)

    logits = mlp_forward(x, w1, b1, w2, b2)
    jax.block_until_ready(logits)
    assert logits.shape == (2, N_CLASSES)

    # Reference mirroring the kernel's mixed precision (bf16 inputs, f32 accumulation).
    x2d_bf = x.reshape(-1, INPUT_SIZE).astype(jnp.bfloat16)
    h_ref = jnp.dot(x2d_bf, w1.astype(jnp.bfloat16),
                    preferred_element_type=jnp.float32) + b1
    h_ref = jnp.maximum(h_ref, 0.0)
    ref = jnp.dot(h_ref.astype(jnp.bfloat16), w2.astype(jnp.bfloat16),
                  preferred_element_type=jnp.float32) + b2
    assert jnp.allclose(logits, ref, atol=2e-2, rtol=2e-2)

    print("KERNEL_OK")
</pallas_src>

<mosaic_0001>
module attributes {stable_mosaic.version = 11 : i64} {
  func.func @_mlp_kernel(%arg0: i32, %arg1: memref<16x784xbf16, #tpu.memory_space<vmem>>, %arg2: memref<784x256xbf16, #tpu.memory_space<vmem>>, %arg3: memref<1x256xf32, #tpu.memory_space<vmem>>, %arg4: memref<256x128xbf16, #tpu.memory_space<vmem>>, %arg5: memref<1x128xf32, #tpu.memory_space<vmem>>, %arg6: memref<16x128xf32, #tpu.memory_space<vmem>>) attributes {dimension_semantics = [#tpu.dimension_semantics<parallel>], iteration_bounds = array<i64: 1>, scalar_prefetch = 0 : i64, scratch_operands = 0 : i64, tpu.core_type = #tpu.core_type<tc>, window_params = [{transform_indices = @transform_0, window_bounds = array<i64: 16, 784>}, {pipeline_mode = #tpu.pipeline_mode<synchronous>, transform_indices = @transform_1, window_bounds = array<i64: 784, 256>}, {pipeline_mode = #tpu.pipeline_mode<synchronous>, transform_indices = @transform_2, window_bounds = array<i64: 1, 256>}, {pipeline_mode = #tpu.pipeline_mode<synchronous>, transform_indices = @transform_3, window_bounds = array<i64: 256, 128>}, {pipeline_mode = #tpu.pipeline_mode<synchronous>, transform_indices = @transform_4, window_bounds = array<i64: 1, 128>}, {transform_indices = @transform_5, window_bounds = array<i64: 16, 128>}]} {
    %c0 = arith.constant 0 : index
    %c0_0 = arith.constant 0 : index
    %0 = vector.load %arg1[%c0, %c0_0] : memref<16x784xbf16, #tpu.memory_space<vmem>>, vector<16x784xbf16>
    %c0_1 = arith.constant 0 : index
    %c0_2 = arith.constant 0 : index
    %1 = vector.load %arg2[%c0_1, %c0_2] : memref<784x256xbf16, #tpu.memory_space<vmem>>, vector<784x256xbf16>
    %cst = arith.constant dense<0.000000e+00> : vector<16x256xf32>
    %2 = tpu.matmul %0, %1, %cst {dimension_numbers = #tpu.dot_dimension_numbers<[1], [0], [0], [1], [0, 0, 1, 1], [], []>} : vector<16x784xbf16>, vector<784x256xbf16>, vector<16x256xf32> -> vector<16x256xf32>
    %c0_3 = arith.constant 0 : index
    %c0_4 = arith.constant 0 : index
    %3 = vector.load %arg3[%c0_3, %c0_4] : memref<1x256xf32, #tpu.memory_space<vmem>>, vector<1x256xf32>
    %4 = vector.broadcast %3 : vector<1x256xf32> to vector<16x256xf32>
    %5 = arith.addf %2, %4 : vector<16x256xf32>
    %cst_5 = arith.constant 0.000000e+00 : f32
    %6 = vector.broadcast %cst_5 : f32 to vector<16x256xf32>
    %7 = arith.maximumf %5, %6 : vector<16x256xf32>
    %8 = arith.truncf %7 : vector<16x256xf32> to vector<16x256xbf16>
    %c0_6 = arith.constant 0 : index
    %c0_7 = arith.constant 0 : index
    %9 = vector.load %arg4[%c0_6, %c0_7] : memref<256x128xbf16, #tpu.memory_space<vmem>>, vector<256x128xbf16>
    %cst_8 = arith.constant dense<0.000000e+00> : vector<16x128xf32>
    %10 = tpu.matmul %8, %9, %cst_8 {dimension_numbers = #tpu.dot_dimension_numbers<[1], [0], [0], [1], [0, 0, 1, 1], [], []>} : vector<16x256xbf16>, vector<256x128xbf16>, vector<16x128xf32> -> vector<16x128xf32>
    %c0_9 = arith.constant 0 : index
    %c0_10 = arith.constant 0 : index
    %11 = vector.load %arg5[%c0_9, %c0_10] : memref<1x128xf32, #tpu.memory_space<vmem>>, vector<1x128xf32>
    %12 = vector.broadcast %11 : vector<1x128xf32> to vector<16x128xf32>
    %13 = arith.addf %10, %12 : vector<16x128xf32>
    %c0_11 = arith.constant 0 : index
    %c0_12 = arith.constant 0 : index
    %14 = vector.load %arg6[%c0_11, %c0_12] : memref<16x128xf32, #tpu.memory_space<vmem>>, vector<16x128xf32>
    tpu.vector_store %arg6[%c0_11, %c0_12], %13 {strides = array<i32>} : memref<16x128xf32, #tpu.memory_space<vmem>>, vector<16x128xf32>,
    return
  }
  func.func @transform_0(%arg0: i32) -> (i32, i32) {
    %c0_i32 = arith.constant 0 : i32
    %c0_i32_0 = arith.constant 0 : i32
    return %arg0, %c0_i32 : i32, i32
  }
  func.func @transform_1(%arg0: i32) -> (i32, i32) {
    %c0_i32 = arith.constant 0 : i32
    %c0_i32_0 = arith.constant 0 : i32
    %c0_i32_1 = arith.constant 0 : i32
    return %c0_i32, %c0_i32_0 : i32, i32
  }
  func.func @transform_2(%arg0: i32) -> (i32, i32) {
    %c0_i32 = arith.constant 0 : i32
    %c0_i32_0 = arith.constant 0 : i32
    %c0_i32_1 = arith.constant 0 : i32
    return %c0_i32, %c0_i32_0 : i32, i32
  }
  func.func @transform_3(%arg0: i32) -> (i32, i32) {
    %c0_i32 = arith.constant 0 : i32
    %c0_i32_0 = arith.constant 0 : i32
    %c0_i32_1 = arith.constant 0 : i32
    return %c0_i32, %c0_i32_0 : i32, i32
  }
  func.func @transform_4(%arg0: i32) -> (i32, i32) {
    %c0_i32 = arith.constant 0 : i32
    %c0_i32_0 = arith.constant 0 : i32
    %c0_i32_1 = arith.constant 0 : i32
    return %c0_i32, %c0_i32_0 : i32, i32
  }
  func.func @transform_5(%arg0: i32) -> (i32, i32) {
    %c0_i32 = arith.constant 0 : i32
    %c0_i32_0 = arith.constant 0 : i32
    return %arg0, %c0_i32 : i32, i32
  }
}

</mosaic_0001>

<llo_original>
// kernel: tpu_custom_call.1
$region0: #{tpu_custom_call.1}
  #allocation0 [shape = 'u32[]', space=smem, size = 0x4, offset = 0x4, fixed_abs, tag = 'smem constant byte address 0x4 - core index']
  #allocation1 [shape = 'u32[72,128]{1,0:T(1,128)}', space=vmem, size = 0x9000, scoped, tag = 'internal scratch']
  %s0 = inlined_call_operand.hbm [shape: bf16[16,784], index: 0, kind: input, shape index: {}]
  %s1 = inlined_call_operand.hbm [shape: bf16[784,256], index: 1, kind: input, shape index: {}]
  %s2 = inlined_call_operand.hbm [shape: f32[1,256], index: 2, kind: input, shape index: {}]
  %s3 = inlined_call_operand.hbm [shape: bf16[256,128], index: 3, kind: input, shape index: {}]
  %s4 = inlined_call_operand.vmem [shape: f32[1,128], index: 4, kind: input, shape index: {}]
  %s5 = inlined_call_operand.hbm [shape: f32[16,128], index: 5, kind: output, shape index: {}]
  %s6 = sld [smem:[#allocation0]]
  $region46: #{tpu_custom_call.1} parent=0
    _
  %s8 = ssub.s32 1, %s6
  %s9 = scalar_select 0, %s8, %s6
  $region1: #{tpu_custom_call.1} parent=0
    #allocation2 [shape = 'u8[28672]{0}', space=vmem, size = 0x7000, scoped, tag = 'input window, operand 0, single buffered']
    #allocation3 [shape = 's32[1]{0}', space=sflag, size = 0x4, scoped, tag = 'scoped memory for tpu_custom_call.1']
    #allocation4 [shape = 's32[1]{0}', space=sflag, size = 0x4, scoped, tag = 'scoped memory for tpu_custom_call.1']
    #allocation5 [shape = 'u8[401408]{0}', space=vmem, size = 0x62000, scoped, tag = 'input window, operand 1, single buffered']
    #allocation6 [shape = 's32[1]{0}', space=sflag, size = 0x4, scoped, tag = 'scoped memory for tpu_custom_call.1']
    #allocation7 [shape = 'u8[1024]{0}', space=vmem, size = 0x400, scoped, tag = 'input window, operand 2, single buffered']
    #allocation8 [shape = 'u8[65536]{0}', space=vmem, size = 0x10000, scoped, tag = 'input window, operand 3, single buffered']
    #allocation9 [shape = 's32[1]{0}', space=sflag, size = 0x4, scoped, tag = 'scoped memory for tpu_custom_call.1']
    #allocation10 [shape = 'u8[8192]{0}', space=vmem, size = 0x2000, scoped, tag = 'output window, operand 0, single buffered']
    %10 = vsyncpa [#allocation3], 0
    %11 = vsyncpa [#allocation6], 0
    %12 = vsyncpa [#allocation9], 0
    %13 = vsyncpa [#allocation4], 0
    // Predicated region
    $region2: #{tpu_custom_call.1} parent=1 // pred_check
      _
    $region3: #{tpu_custom_call.1} parent=1 // pred_check_branch
      %15 = sbr.rel (0) target = $region5
    $region4: #{tpu_custom_call.1} parent=1 // pred_region
      %17 = vsyncadd [#allocation3], 0
      %s18 = sshll.u32 %s0, 4
      %s19 = int_to_ptr.hbm [resolvable:$true] %s18
      %s20 = sshll.u32 [#allocation2], 4
      %s21 = int_to_ptr.vmem [resolvable:$true] %s20
      %26 = dma.hbm_to_vmem [thread:$0]  %s19, 896, %s21, [#allocation3], 448, 448, 28
    $region5: #{tpu_custom_call.1} parent=1 // pred_fallthru
      _
    // Predicated region
    $region6: #{tpu_custom_call.1} parent=1 // pred_check
      _
    $region7: #{tpu_custom_call.1} parent=1 // pred_check_branch
      %28 = sbr.rel (0) target = $region9
    $region8: #{tpu_custom_call.1} parent=1 // pred_region
      %30 = vsyncadd [#allocation6], 0
      %s31 = sshll.u32 %s1, 4
      %s32 = int_to_ptr.hbm [resolvable:$true] %s31
      %s33 = sshll.u32 [#allocation5], 4
      %s34 = int_to_ptr.vmem [resolvable:$true] %s33
      %39 = dma.hbm_to_vmem [thread:$0]  %s32, 12544, %s34, [#allocation6], 128, 128, 8
    $region9: #{tpu_custom_call.1} parent=1 // pred_fallthru
      _
    // Predicated region
    $region10: #{tpu_custom_call.1} parent=1 // pred_check
      _
    $region11: #{tpu_custom_call.1} parent=1 // pred_check_branch
      %41 = sbr.rel (0) target = $region13
    $region12: #{tpu_custom_call.1} parent=1 // pred_region
      %43 = vsyncadd [#allocation6], 0
      %s45 = sshll.u32 %s2, 4
      %s46 = int_to_ptr.hbm [resolvable:$true] %s45
      %s47 = sshll.u32 [#allocation7], 4
      %s48 = int_to_ptr.vmem [resolvable:$true] %s47
      %50 = dma.hbm_to_vmem [thread:$0]  %s46, 32, %s48, [#allocation6]
    $region13: #{tpu_custom_call.1} parent=1 // pred_fallthru
      _
    // Predicated region
    $region14: #{tpu_custom_call.1} parent=1 // pred_check
      _
    $region15: #{tpu_custom_call.1} parent=1 // pred_check_branch
      %52 = sbr.rel (0) target = $region17
    $region16: #{tpu_custom_call.1} parent=1 // pred_region
      %54 = vsyncadd [#allocation9], 0
      %s55 = sshll.u32 %s3, 4
      %s56 = int_to_ptr.hbm [resolvable:$true] %s55
      %s57 = sshll.u32 [#allocation8], 4
      %s58 = int_to_ptr.vmem [resolvable:$true] %s57
      %63 = dma.hbm_to_vmem [thread:$0]  %s56, 2048, %s58, [#allocation9], 64, 64, 4
    $region17: #{tpu_custom_call.1} parent=1 // pred_fallthru
      _
    // Predicated region
    $region18: #{tpu_custom_call.1} parent=1 // pred_check
      _
    $region19: #{tpu_custom_call.1} parent=1 // pred_check_branch
      %65 = sbr.rel (0) target = $region21
    $region20: #{tpu_custom_call.1} parent=1 // pred_region
      _
    $region21: #{tpu_custom_call.1} parent=1 // pred_fallthru
      _
    // Predicated region
    $region22: #{tpu_custom_call.1} parent=1 // pred_check
      _
    $region23: #{tpu_custom_call.1} parent=1 // pred_check_branch
      %67 = sbr.rel (0) target = $region25
    $region24: #{tpu_custom_call.1} parent=1 // pred_region
      %69 = dma.done [#allocation3], 896
    $region25: #{tpu_custom_call.1} parent=1 // pred_fallthru
      _
    // Predicated region
    $region26: #{tpu_custom_call.1} parent=1 // pred_check
      _
    $region27: #{tpu_custom_call.1} parent=1 // pred_check_branch
      %71 = sbr.rel (0) target = $region29
    $region28: #{tpu_custom_call.1} parent=1 // pred_region
      %73 = dma.done [#allocation6], 12544
    $region29: #{tpu_custom_call.1} parent=1 // pred_fallthru
      _
    // Predicated region
    $region30: #{tpu_custom_call.1} parent=1 // pred_check
      _
    $region31: #{tpu_custom_call.1} parent=1 // pred_check_branch
      %75 = sbr.rel (0) target = $region33
    $region32: #{tpu_custom_call.1} parent=1 // pred_region
      %77 = dma.done [#allocation6], 32
    $region33: #{tpu_custom_call.1} parent=1 // pred_fallthru
      _
    // Predicated region
    $region34: #{tpu_custom_call.1} parent=1 // pred_check
      _
    $region35: #{tpu_custom_call.1} parent=1 // pred_check_branch
      %79 = sbr.rel (0) target = $region37
    $region36: #{tpu_custom_call.1} parent=1 // pred_region
      %81 = dma.done [#allocation9], 2048
    $region37: #{tpu_custom_call.1} parent=1 // pred_fallthru
      _
    %v83 = vld [vmem:[#allocation2] sm:$0xff]
    %v84 = vld [vmem:[#allocation2 + $0x8] sm:$0xff]
    %v85 = vld [vmem:[#allocation2 + $0x10] sm:$0xff]
    %v86 = vld [vmem:[#allocation2 + $0x18] sm:$0xf]
    %v87 = vld [vmem:[#allocation2 + $0x1c] sm:$0xff]
    %v88 = vld [vmem:[#allocation2 + $0x24] sm:$0xff]
    %v89 = vld [vmem:[#allocation2 + $0x2c] sm:$0xff]
    %v90 = vld [vmem:[#allocation2 + $0x34] sm:$0xf]
    %v91 = vld [vmem:[#allocation5] sm:$0xff]
    %v92 = vld [vmem:[#allocation5 + $0x8] sm:$0xff]
    %v93 = vld [vmem:[#allocation5 + $0x10] sm:$0xff]
    %v94 = vld [vmem:[#allocation5 + $0x18] sm:$0xff]
    %v95 = vld [vmem:[#allocation5 + $0x20] sm:$0xff]
    %v96 = vld [vmem:[#allocation5 + $0x28] sm:$0xff]
    %v97 = vld [vmem:[#allocation5 + $0x30] sm:$0xff]
    %v98 = vld [vmem:[#allocation5 + $0x38] sm:$0xff]
    %v99 = vld [vmem:[#allocation5 + $0x40] sm:$0xff]
    %v100 = vld [vmem:[#allocation5 + $0x48] sm:$0xff]
    %v101 = vld [vmem:[#allocation5 + $0x50] sm:$0xff]
    %v102 = vld [vmem:[#allocation5 + $0x58] sm:$0xff]
    %v103 = vld [vmem:[#allocation5 + $0x60] sm:$0xff]
    %v104 = vld [vmem:[#allocation5 + $0x68] sm:$0xff]
    %v105 = vld [vmem:[#allocation5 + $0x70] sm:$0xff]
    %v106 = vld [vmem:[#allocation5 + $0x78] sm:$0xff]
    %v107 = vld [vmem:[#allocation5 + $0x80] sm:$0xff]
    %v108 = vld [vmem:[#allocation5 + $0x88] sm:$0xff]
    %v109 = vld [vmem:[#allocation5 + $0x90] sm:$0xff]
    %v110 = vld [vmem:[#allocation5 + $0x98] sm:$0xff]
    %v111 = vld [vmem:[#allocation5 + $0xa0] sm:$0xff]
    %v112 = vld [vmem:[#allocation5 + $0xa8] sm:$0xff]
    %v113 = vld [vmem:[#allocation5 + $0xb0] sm:$0xff]
    %v114 = vld [vmem:[#allocation5 + $0xb8] sm:$0xff]
    %v115 = vld [vmem:[#allocation5 + $0xc0] sm:$0xff]
    %v116 = vld [vmem:[#allocation5 + $0xc8] sm:$0xff]
    %v117 = vld [vmem:[#allocation5 + $0xd0] sm:$0xff]
    %v118 = vld [vmem:[#allocation5 + $0xd8] sm:$0xff]
    %v119 = vld [vmem:[#allocation5 + $0xe0] sm:$0xff]
    %v120 = vld [vmem:[#allocation5 + $0xe8] sm:$0xff]
    %v121 = vld [vmem:[#allocation5 + $0xf0] sm:$0xff]
    %v122 = vld [vmem:[#allocation5 + $0xf8] sm:$0xff]
    %v123 = vld [vmem:[#allocation5 + $0x100] sm:$0xff]
    %v124 = vld [vmem:[#allocation5 + $0x108] sm:$0xff]
    %v125 = vld [vmem:[#allocation5 + $0x110] sm:$0xff]
    %v126 = vld [vmem:[#allocation5 + $0x118] sm:$0xff]
    %v127 = vld [vmem:[#allocation5 + $0x120] sm:$0xff]
    %v128 = vld [vmem:[#allocation5 + $0x128] sm:$0xff]
    %v129 = vld [vmem:[#allocation5 + $0x130] sm:$0xff]
    %v130 = vld [vmem:[#allocation5 + $0x138] sm:$0xff]
    %v131 = vld [vmem:[#allocation5 + $0x140] sm:$0xff]
    %v132 = vld [vmem:[#allocation5 + $0x148] sm:$0xff]
    %v133 = vld [vmem:[#allocation5 + $0x150] sm:$0xff]
    %v134 = vld [vmem:[#allocation5 + $0x158] sm:$0xff]
    %v135 = vld [vmem:[#allocation5 + $0x160] sm:$0xff]
    %v136 = vld [vmem:[#allocation5 + $0x168] sm:$0xff]
    %v137 = vld [vmem:[#allocation5 + $0x170] sm:$0xff]
    %v138 = vld [vmem:[#allocation5 + $0x178] sm:$0xff]
    %v139 = vld [vmem:[#allocation5 + $0x180] sm:$0xff]
    %v140 = vld [vmem:[#allocation5 + $0x188] sm:$0xff]
    %v141 = vld [vmem:[#allocation5 + $0x190] sm:$0xff]
    %v142 = vld [vmem:[#allocation5 + $0x198] sm:$0xff]
    %v143 = vld [vmem:[#allocation5 + $0x1a0] sm:$0xff]
    %v144 = vld [vmem:[#allocation5 + $0x1a8] sm:$0xff]
    %v145 = vld [vmem:[#allocation5 + $0x1b0] sm:$0xff]
    %v146 = vld [vmem:[#allocation5 + $0x1b8] sm:$0xff]
    %v147 = vld [vmem:[#allocation5 + $0x1c0] sm:$0xff]
    %v148 = vld [vmem:[#allocation5 + $0x1c8] sm:$0xff]
    %v149 = vld [vmem:[#allocation5 + $0x1d0] sm:$0xff]
    %v150 = vld [vmem:[#allocation5 + $0x1d8] sm:$0xff]
    %v151 = vld [vmem:[#allocation5 + $0x1e0] sm:$0xff]
    %v152 = vld [vmem:[#allocation5 + $0x1e8] sm:$0xff]
    %v153 = vld [vmem:[#allocation5 + $0x1f0] sm:$0xff]
    %v154 = vld [vmem:[#allocation5 + $0x1f8] sm:$0xff]
    %v155 = vld [vmem:[#allocation5 + $0x200] sm:$0xff]
    %v156 = vld [vmem:[#allocation5 + $0x208] sm:$0xff]
    %v157 = vld [vmem:[#allocation5 + $0x210] sm:$0xff]
    %v158 = vld [vmem:[#allocation5 + $0x218] sm:$0xff]
    %v159 = vld [vmem:[#allocation5 + $0x220] sm:$0xff]
    %v160 = vld [vmem:[#allocation5 + $0x228] sm:$0xff]
    %v161 = vld [vmem:[#allocation5 + $0x230] sm:$0xff]
    %v162 = vld [vmem:[#allocation5 + $0x238] sm:$0xff]
    %v163 = vld [vmem:[#allocation5 + $0x240] sm:$0xff]
    %v164 = vld [vmem:[#allocation5 + $0x248] sm:$0xff]
    %v165 = vld [vmem:[#allocation5 + $0x250] sm:$0xff]
    %v166 = vld [vmem:[#allocation5 + $0x258] sm:$0xff]
    %v167 = vld [vmem:[#allocation5 + $0x260] sm:$0xff]
    %v168 = vld [vmem:[#allocation5 + $0x268] sm:$0xff]
    %v169 = vld [vmem:[#allocation5 + $0x270] sm:$0xff]
    %v170 = vld [vmem:[#allocation5 + $0x278] sm:$0xff]
    %v171 = vld [vmem:[#allocation5 + $0x280] sm:$0xff]
    %v172 = vld [vmem:[#allocation5 + $0x288] sm:$0xff]
    %v173 = vld [vmem:[#allocation5 + $0x290] sm:$0xff]
    %v174 = vld [vmem:[#allocation5 + $0x298] sm:$0xff]
    %v175 = vld [vmem:[#allocation5 + $0x2a0] sm:$0xff]
    %v176 = vld [vmem:[#allocation5 + $0x2a8] sm:$0xff]
    %v177 = vld [vmem:[#allocation5 + $0x2b0] sm:$0xff]
    %v178 = vld [vmem:[#allocation5 + $0x2b8] sm:$0xff]
    %v179 = vld [vmem:[#allocation5 + $0x2c0] sm:$0xff]
    %v180 = vld [vmem:[#allocation5 + $0x2c8] sm:$0xff]
    %v181 = vld [vmem:[#allocation5 + $0x2d0] sm:$0xff]
    %v182 = vld [vmem:[#allocation5 + $0x2d8] sm:$0xff]
    %v183 = vld [vmem:[#allocation5 + $0x2e0] sm:$0xff]
    %v184 = vld [vmem:[#allocation5 + $0x2e8] sm:$0xff]
    %v185 = vld [vmem:[#allocation5 + $0x2f0] sm:$0xff]
    %v186 = vld [vmem:[#allocation5 + $0x2f8] sm:$0xff]
    %v187 = vld [vmem:[#allocation5 + $0x300] sm:$0xff]
    %v188 = vld [vmem:[#allocation5 + $0x308] sm:$0xff]
    %v189 = vld [vmem:[#allocation7] sm:$0x3]
    %v191 = vperm.slane %v189, 0
    %v192 = vperm.slane %v189, 1
    %v203 = vunpack.c.l.b16 %v83
    %v204 = vunpack.c.h.b16 %v83
    %v205 = vunpack.c.l.b16 %v84
    %v206 = vunpack.c.h.b16 %v84
    %v207 = vunpack.c.l.b16 %v85
    %v208 = vunpack.c.h.b16 %v85
    %v209 = vunpack.c.l.b16 %v86
    %v210 = vunpack.c.l.b16 %v87
    %v211 = vunpack.c.h.b16 %v87
    %v212 = vunpack.c.l.b16 %v88
    %v213 = vunpack.c.h.b16 %v88
    %v214 = vunpack.c.l.b16 %v89
    %v215 = vunpack.c.h.b16 %v89
    %v216 = vunpack.c.l.b16 %v90
    %v217 = vpack.c.b16 %v210, %v203
    %v218 = vpack.c.b16 %v211, %v204
    %v219 = vpack.c.b16 %v212, %v205
    %v220 = vpack.c.b16 %v213, %v206
    %v221 = vpack.c.b16 %v214, %v207
    %v222 = vpack.c.b16 %v215, %v208
    %v223 = vpack.c.b16 %v216, %v209
    %v328 = vunpack.c.l.b16 %v91
    %v329 = vunpack.c.h.b16 %v91
    %v330 = vunpack.c.l.b16 %v92
    %v331 = vunpack.c.h.b16 %v92
    %v332 = vunpack.c.l.b16 %v93
    %v333 = vunpack.c.h.b16 %v93
    %v334 = vunpack.c.l.b16 %v94
    %v335 = vunpack.c.h.b16 %v94
    %v336 = vunpack.c.l.b16 %v95
    %v337 = vunpack.c.h.b16 %v95
    %v338 = vunpack.c.l.b16 %v96
    %v339 = vunpack.c.h.b16 %v96
    %v340 = vunpack.c.l.b16 %v97
    %v341 = vunpack.c.h.b16 %v97
    %v342 = vunpack.c.l.b16 %v98
    %v343 = vunpack.c.h.b16 %v98
    %v344 = vunpack.c.l.b16 %v99
    %v345 = vunpack.c.h.b16 %v99
    %v346 = vunpack.c.l.b16 %v100
    %v347 = vunpack.c.h.b16 %v100
    %v348 = vunpack.c.l.b16 %v101
    %v349 = vunpack.c.h.b16 %v101
    %v350 = vunpack.c.l.b16 %v102
    %v351 = vunpack.c.h.b16 %v102
    %v352 = vunpack.c.l.b16 %v103
    %v353 = vunpack.c.h.b16 %v103
    %v354 = vunpack.c.l.b16 %v104
    %v355 = vunpack.c.h.b16 %v104
    %v356 = vunpack.c.l.b16 %v105
    %v357 = vunpack.c.h.b16 %v105
    %v358 = vunpack.c.l.b16 %v106
    %v359 = vunpack.c.h.b16 %v106
    %v360 = vunpack.c.l.b16 %v107
    %v361 = vunpack.c.h.b16 %v107
    %v362 = vunpack.c.l.b16 %v108
    %v363 = vunpack.c.h.b16 %v108
    %v364 = vunpack.c.l.b16 %v109
    %v365 = vunpack.c.h.b16 %v109
    %v366 = vunpack.c.l.b16 %v110
    %v367 = vunpack.c.h.b16 %v110
    %v368 = vunpack.c.l.b16 %v111
    %v369 = vunpack.c.h.b16 %v111
    %v370 = vunpack.c.l.b16 %v112
    %v371 = vunpack.c.h.b16 %v112
    %v372 = vunpack.c.l.b16 %v113
    %v373 = vunpack.c.h.b16 %v113
    %v374 = vunpack.c.l.b16 %v114
    %v375 = vunpack.c.h.b16 %v114
    %v376 = vunpack.c.l.b16 %v115
    %v377 = vunpack.c.h.b16 %v115
    %v378 = vunpack.c.l.b16 %v116
    %v379 = vunpack.c.h.b16 %v116
    %v380 = vunpack.c.l.b16 %v117
    %v381 = vunpack.c.h.b16 %v117
    %v382 = vunpack.c.l.b16 %v118
    %v383 = vunpack.c.h.b16 %v118
    %v384 = vunpack.c.l.b16 %v119
    %v385 = vunpack.c.h.b16 %v119
    %v386 = vunpack.c.l.b16 %v120
    %v387 = vunpack.c.h.b16 %v120
    %v388 = vunpack.c.l.b16 %v121
    %v389 = vunpack.c.h.b16 %v121
    %v390 = vunpack.c.l.b16 %v122
    %v391 = vunpack.c.h.b16 %v122
    %v392 = vunpack.c.l.b16 %v123
    %v393 = vunpack.c.h.b16 %v123
    %v394 = vunpack.c.l.b16 %v124
    %v395 = vunpack.c.h.b16 %v124
    %v396 = vunpack.c.l.b16 %v125
    %v397 = vunpack.c.h.b16 %v125
    %v398 = vunpack.c.l.b16 %v126
    %v399 = vunpack.c.h.b16 %v126
    %v400 = vunpack.c.l.b16 %v127
    %v401 = vunpack.c.h.b16 %v127
    %v402 = vunpack.c.l.b16 %v128
    %v403 = vunpack.c.h.b16 %v128
    %v404 = vunpack.c.l.b16 %v129
    %v405 = vunpack.c.h.b16 %v129
    %v406 = vunpack.c.l.b16 %v130
    %v407 = vunpack.c.h.b16 %v130
    %v408 = vunpack.c.l.b16 %v131
    %v409 = vunpack.c.h.b16 %v131
    %v410 = vunpack.c.l.b16 %v132
    %v411 = vunpack.c.h.b16 %v132
    %v412 = vunpack.c.l.b16 %v133
    %v413 = vunpack.c.h.b16 %v133
    %v414 = vunpack.c.l.b16 %v134
    %v415 = vunpack.c.h.b16 %v134
    %v416 = vunpack.c.l.b16 %v135
    %v417 = vunpack.c.h.b16 %v135
    %v418 = vunpack.c.l.b16 %v136
    %v419 = vunpack.c.h.b16 %v136
    %v420 = vunpack.c.l.b16 %v137
    %v421 = vunpack.c.h.b16 %v137
    %v422 = vunpack.c.l.b16 %v138
    %v423 = vunpack.c.h.b16 %v138
    %v424 = vunpack.c.l.b16 %v139
    %v425 = vunpack.c.h.b16 %v139
    %v426 = vunpack.c.l.b16 %v140
    %v427 = vunpack.c.h.b16 %v140
    %v428 = vunpack.c.l.b16 %v141
    %v429 = vunpack.c.h.b16 %v141
    %v430 = vunpack.c.l.b16 %v142
    %v431 = vunpack.c.h.b16 %v142
    %v432 = vunpack.c.l.b16 %v143
    %v433 = vunpack.c.h.b16 %v143
    %v434 = vunpack.c.l.b16 %v144
    %v435 = vunpack.c.h.b16 %v144
    %v436 = vunpack.c.l.b16 %v145
    %v437 = vunpack.c.h.b16 %v145
    %v438 = vunpack.c.l.b16 %v146
    %v439 = vunpack.c.h.b16 %v146
    %v440 = vunpack.c.l.b16 %v147
    %v441 = vunpack.c.h.b16 %v147
    %v442 = vunpack.c.l.b16 %v148
    %v443 = vunpack.c.h.b16 %v148
    %v444 = vunpack.c.l.b16 %v149
    %v445 = vunpack.c.h.b16 %v149
    %v446 = vunpack.c.l.b16 %v150
    %v447 = vunpack.c.h.b16 %v150
    %v448 = vunpack.c.l.b16 %v151
    %v449 = vunpack.c.h.b16 %v151
    %v450 = vunpack.c.l.b16 %v152
    %v451 = vunpack.c.h.b16 %v152
    %v452 = vunpack.c.l.b16 %v153
    %v453 = vunpack.c.h.b16 %v153
    %v454 = vunpack.c.l.b16 %v154
    %v455 = vunpack.c.h.b16 %v154
    %v456 = vunpack.c.l.b16 %v155
    %v457 = vunpack.c.h.b16 %v155
    %v458 = vunpack.c.l.b16 %v156
    %v459 = vunpack.c.h.b16 %v156
    %v460 = vunpack.c.l.b16 %v157
    %v461 = vunpack.c.h.b16 %v157
    %v462 = vunpack.c.l.b16 %v158
    %v463 = vunpack.c.h.b16 %v158
    %v464 = vunpack.c.l.b16 %v159
    %v465 = vunpack.c.h.b16 %v159
    %v466 = vunpack.c.l.b16 %v160
    %v467 = vunpack.c.h.b16 %v160
    %v468 = vunpack.c.l.b16 %v161
    %v469 = vunpack.c.h.b16 %v161
    %v470 = vunpack.c.l.b16 %v162
    %v471 = vunpack.c.h.b16 %v162
    %v472 = vunpack.c.l.b16 %v163
    %v473 = vunpack.c.h.b16 %v163
    %v474 = vunpack.c.l.b16 %v164
    %v475 = vunpack.c.h.b16 %v164
    %v476 = vunpack.c.l.b16 %v165
    %v477 = vunpack.c.h.b16 %v165
    %v478 = vunpack.c.l.b16 %v166
    %v479 = vunpack.c.h.b16 %v166
    %v480 = vunpack.c.l.b16 %v167
    %v481 = vunpack.c.h.b16 %v167
    %v482 = vunpack.c.l.b16 %v168
    %v483 = vunpack.c.h.b16 %v168
    %v484 = vunpack.c.l.b16 %v169
    %v485 = vunpack.c.h.b16 %v169
    %v486 = vunpack.c.l.b16 %v170
    %v487 = vunpack.c.h.b16 %v170
    %v488 = vunpack.c.l.b16 %v171
    %v489 = vunpack.c.h.b16 %v171
    %v490 = vunpack.c.l.b16 %v172
    %v491 = vunpack.c.h.b16 %v172
    %v492 = vunpack.c.l.b16 %v173
    %v493 = vunpack.c.h.b16 %v173
    %v494 = vunpack.c.l.b16 %v174
    %v495 = vunpack.c.h.b16 %v174
    %v496 = vunpack.c.l.b16 %v175
    %v497 = vunpack.c.h.b16 %v175
    %v498 = vunpack.c.l.b16 %v176
    %v499 = vunpack.c.h.b16 %v176
    %v500 = vunpack.c.l.b16 %v177
    %v501 = vunpack.c.h.b16 %v177
    %v502 = vunpack.c.l.b16 %v178
    %v503 = vunpack.c.h.b16 %v178
    %v504 = vunpack.c.l.b16 %v179
    %v505 = vunpack.c.h.b16 %v179
    %v506 = vunpack.c.l.b16 %v180
    %v507 = vunpack.c.h.b16 %v180
    %v508 = vunpack.c.l.b16 %v181
    %v509 = vunpack.c.h.b16 %v181
    %v510 = vunpack.c.l.b16 %v182
    %v511 = vunpack.c.h.b16 %v182
    %v512 = vunpack.c.l.b16 %v183
    %v513 = vunpack.c.h.b16 %v183
    %v514 = vunpack.c.l.b16 %v184
    %v515 = vunpack.c.h.b16 %v184
    %v516 = vunpack.c.l.b16 %v185
    %v517 = vunpack.c.h.b16 %v185
    %v518 = vunpack.c.l.b16 %v186
    %v519 = vunpack.c.h.b16 %v186
    %v520 = vunpack.c.l.b16 %v187
    %v521 = vunpack.c.h.b16 %v187
    %v522 = vunpack.c.l.b16 %v188
    %v523 = vunpack.c.h.b16 %v188
    %v524 = vpack.c.b16 %v330, %v328
    %v525 = vpack.c.b16 %v331, %v329
    %v526 = vpack.c.b16 %v334, %v332
    %v527 = vpack.c.b16 %v335, %v333
    %v528 = vpack.c.b16 %v338, %v336
    %v529 = vpack.c.b16 %v339, %v337
    %v530 = vpack.c.b16 %v342, %v340
    %v531 = vpack.c.b16 %v343, %v341
    %v532 = vpack.c.b16 %v346, %v344
    %v533 = vpack.c.b16 %v347, %v345
    %v534 = vpack.c.b16 %v350, %v348
    %v535 = vpack.c.b16 %v351, %v349
    %v536 = vpack.c.b16 %v354, %v352
    %v537 = vpack.c.b16 %v355, %v353
    %v538 = vpack.c.b16 %v358, %v356
    %v539 = vpack.c.b16 %v359, %v357
    %v540 = vpack.c.b16 %v362, %v360
    %v541 = vpack.c.b16 %v363, %v361
    %v542 = vpack.c.b16 %v366, %v364
    %v543 = vpack.c.b16 %v367, %v365
    %v544 = vpack.c.b16 %v370, %v368
    %v545 = vpack.c.b16 %v371, %v369
    %v546 = vpack.c.b16 %v374, %v372
    %v547 = vpack.c.b16 %v375, %v373
    %v548 = vpack.c.b16 %v378, %v376
    %v549 = vpack.c.b16 %v379, %v377
    %v550 = vpack.c.b16 %v382, %v380
    %v551 = vpack.c.b16 %v383, %v381
    %v552 = vpack.c.b16 %v386, %v384
    %v553 = vpack.c.b16 %v387, %v385
    %v554 = vpack.c.b16 %v390, %v388
    %v555 = vpack.c.b16 %v391, %v389
    %v556 = vpack.c.b16 %v394, %v392
    %v557 = vpack.c.b16 %v395, %v393
    %v558 = vpack.c.b16 %v398, %v396
    %v559 = vpack.c.b16 %v399, %v397
    %v560 = vpack.c.b16 %v402, %v400
    %v561 = vpack.c.b16 %v403, %v401
    %v562 = vpack.c.b16 %v406, %v404
    %v563 = vpack.c.b16 %v407, %v405
    %v564 = vpack.c.b16 %v410, %v408
    %v565 = vpack.c.b16 %v411, %v409
    %v566 = vpack.c.b16 %v414, %v412
    %v567 = vpack.c.b16 %v415, %v413
    %v568 = vpack.c.b16 %v418, %v416
    %v569 = vpack.c.b16 %v419, %v417
    %v570 = vpack.c.b16 %v422, %v420
    %v571 = vpack.c.b16 %v423, %v421
    %v572 = vpack.c.b16 %v426, %v424
    %v573 = vpack.c.b16 %v427, %v425
    %v574 = vpack.c.b16 %v430, %v428
    %v575 = vpack.c.b16 %v431, %v429
    %v576 = vpack.c.b16 %v434, %v432
    %v577 = vpack.c.b16 %v435, %v433
    %v578 = vpack.c.b16 %v438, %v436
    %v579 = vpack.c.b16 %v439, %v437
    %v580 = vpack.c.b16 %v442, %v440
    %v581 = vpack.c.b16 %v443, %v441
    %v582 = vpack.c.b16 %v446, %v444
    %v583 = vpack.c.b16 %v447, %v445
    %v584 = vpack.c.b16 %v450, %v448
    %v585 = vpack.c.b16 %v451, %v449
    %v586 = vpack.c.b16 %v454, %v452
    %v587 = vpack.c.b16 %v455, %v453
    %v588 = vpack.c.b16 %v458, %v456
    %v589 = vpack.c.b16 %v459, %v457
    %v590 = vpack.c.b16 %v462, %v460
    %v591 = vpack.c.b16 %v463, %v461
    %v592 = vpack.c.b16 %v466, %v464
    %v593 = vpack.c.b16 %v467, %v465
    %v594 = vpack.c.b16 %v470, %v468
    %v595 = vpack.c.b16 %v471, %v469
    %v596 = vpack.c.b16 %v474, %v472
    %v597 = vpack.c.b16 %v475, %v473
    %v598 = vpack.c.b16 %v478, %v476
    %v599 = vpack.c.b16 %v479, %v477
    %v600 = vpack.c.b16 %v482, %v480
    %v601 = vpack.c.b16 %v483, %v481
    %v602 = vpack.c.b16 %v486, %v484
    %v603 = vpack.c.b16 %v487, %v485
    %v604 = vpack.c.b16 %v490, %v488
    %v605 = vpack.c.b16 %v491, %v489
    %v606 = vpack.c.b16 %v494, %v492
    %v607 = vpack.c.b16 %v495, %v493
    %v608 = vpack.c.b16 %v498, %v496
    %v609 = vpack.c.b16 %v499, %v497
    %v610 = vpack.c.b16 %v502, %v500
    %v611 = vpack.c.b16 %v503, %v501
    %v612 = vpack.c.b16 %v506, %v504
    %v613 = vpack.c.b16 %v507, %v505
    %v614 = vpack.c.b16 %v510, %v508
    %v615 = vpack.c.b16 %v511, %v509
    %v616 = vpack.c.b16 %v514, %v512
    %v617 = vpack.c.b16 %v515, %v513
    %v618 = vpack.c.b16 %v518, %v516
    %v619 = vpack.c.b16 %v519, %v517
    %v620 = vpack.c.b16 %v522, %v520
    %v621 = vpack.c.b16 %v523, %v521
    %vm720 = vcmask 130048
    %v722 = vsel %vm720, %v223, 0
    %724 = vmatpush.bf16.msra.mxu0 %v538
    %725 = vmatpush.bf16.msra.mxu0 %v536
    %726 = vmatpush.bf16.msra.mxu0 %v534
    %727 = vmatpush.bf16.msra.mxu0 %v532
    %728 = vmatpush.bf16.msra.mxu0 %v530
    %729 = vmatpush.bf16.msra.mxu0 %v528
    %730 = vmatpush.bf16.msra.mxu0 %v526
    %731 = vmatpush.bf16.msra.mxu0 %v524
    %732 = vmatmul.bf16.gmra.mxu0 %v217
    %v733 = vpop.f32.mrf.mxu0
    %v734 = vadd.f32 %v191, %v733
    %v735 = vpop.f32.mrf.mxu0
    %v736 = vadd.f32 %v191, %v735
    %737 = vdwg.mxu0
    %738 = vmatpush.bf16.msra.mxu0 %v554
    %739 = vmatpush.bf16.msra.mxu0 %v552
    %740 = vmatpush.bf16.msra.mxu0 %v550
    %741 = vmatpush.bf16.msra.mxu0 %v548
    %742 = vmatpush.bf16.msra.mxu0 %v546
    %743 = vmatpush.bf16.msra.mxu0 %v544
    %744 = vmatpush.bf16.msra.mxu0 %v542
    %745 = vmatpush.bf16.msra.mxu0 %v540
    %746 = vmatmul.bf16.gmra.mxu0 %v218
    %v747 = vpop.f32.mrf.mxu0
    %v748 = vadd.f32 %v734, %v747
    %v749 = vpop.f32.mrf.mxu0
    %v750 = vadd.f32 %v736, %v749
    %751 = vdwg.mxu0
    %752 = vmatpush.bf16.msra.mxu0 %v570
    %753 = vmatpush.bf16.msra.mxu0 %v568
    %754 = vmatpush.bf16.msra.mxu0 %v566
    %755 = vmatpush.bf16.msra.mxu0 %v564
    %756 = vmatpush.bf16.msra.mxu0 %v562
    %757 = vmatpush.bf16.msra.mxu0 %v560
    %758 = vmatpush.bf16.msra.mxu0 %v558
    %759 = vmatpush.bf16.msra.mxu0 %v556
    %760 = vmatmul.bf16.gmra.mxu0 %v219
    %v761 = vpop.f32.mrf.mxu0
    %v762 = vadd.f32 %v748, %v761
    %v763 = vpop.f32.mrf.mxu0
    %v764 = vadd.f32 %v750, %v763
    %765 = vdwg.mxu0
    %766 = vmatpush.bf16.msra.mxu0 %v586
    %767 = vmatpush.bf16.msra.mxu0 %v584
    %768 = vmatpush.bf16.msra.mxu0 %v582
    %769 = vmatpush.bf16.msra.mxu0 %v580
    %770 = vmatpush.bf16.msra.mxu0 %v578
    %771 = vmatpush.bf16.msra.mxu0 %v576
    %772 = vmatpush.bf16.msra.mxu0 %v574
    %773 = vmatpush.bf16.msra.mxu0 %v572
    %774 = vmatmul.bf16.gmra.mxu0 %v220
    %v775 = vpop.f32.mrf.mxu0
    %v776 = vadd.f32 %v762, %v775
    %v777 = vpop.f32.mrf.mxu0
    %v778 = vadd.f32 %v764, %v777
    %779 = vdwg.mxu0
    %780 = vmatpush.bf16.msra.mxu0 %v602
    %781 = vmatpush.bf16.msra.mxu0 %v600
    %782 = vmatpush.bf16.msra.mxu0 %v598
    %783 = vmatpush.bf16.msra.mxu0 %v596
    %784 = vmatpush.bf16.msra.mxu0 %v594
    %785 = vmatpush.bf16.msra.mxu0 %v592
    %786 = vmatpush.bf16.msra.mxu0 %v590
    %787 = vmatpush.bf16.msra.mxu0 %v588
    %788 = vmatmul.bf16.gmra.mxu0 %v221
    %v789 = vpop.f32.mrf.mxu0
    %v790 = vadd.f32 %v776, %v789
    %v791 = vpop.f32.mrf.mxu0
    %v792 = vadd.f32 %v778, %v791
    %793 = vdwg.mxu0
    %794 = vmatpush.bf16.msra.mxu0 %v618
    %795 = vmatpush.bf16.msra.mxu0 %v616
    %796 = vmatpush.bf16.msra.mxu0 %v614
    %797 = vmatpush.bf16.msra.mxu0 %v612
    %798 = vmatpush.bf16.msra.mxu0 %v610
    %799 = vmatpush.bf16.msra.mxu0 %v608
    %800 = vmatpush.bf16.msra.mxu0 %v606
    %801 = vmatpush.bf16.msra.mxu0 %v604
    %802 = vmatmul.bf16.gmra.mxu0 %v222
    %v803 = vpop.f32.mrf.mxu0
    %v804 = vadd.f32 %v790, %v803
    %v805 = vpop.f32.mrf.mxu0
    %v806 = vadd.f32 %v792, %v805
    %807 = vdwg.mxu0
    %808 = vmatpush.bf16.msra.mxu0 0
    %809 = vmatpush.bf16.msra.mxu0 0
    %810 = vmatpush.bf16.msra.mxu0 0
    %811 = vmatpush.bf16.msra.mxu0 0
    %812 = vmatpush.bf16.msra.mxu0 0
    %813 = vmatpush.bf16.msra.mxu0 0
    %814 = vmatpush.bf16.msra.mxu0 0
    %815 = vmatpush.bf16.msra.mxu0 %v620
    %816 = vmatmul.bf16.gmra.mxu0 %v722
    %v817 = vpop.f32.mrf.mxu0
    %v818 = vadd.f32 %v804, %v817
    %v819 = vpop.f32.mrf.mxu0
    %v820 = vadd.f32 %v806, %v819
    %821 = vdwg.mxu0
    %822 = vmatpush.bf16.msra.mxu0 %v539
    %823 = vmatpush.bf16.msra.mxu0 %v537
    %824 = vmatpush.bf16.msra.mxu0 %v535
    %825 = vmatpush.bf16.msra.mxu0 %v533
    %826 = vmatpush.bf16.msra.mxu0 %v531
    %827 = vmatpush.bf16.msra.mxu0 %v529
    %828 = vmatpush.bf16.msra.mxu0 %v527
    %829 = vmatpush.bf16.msra.mxu0 %v525
    %830 = vmatmul.bf16.gmra.mxu0 %v217
    %v831 = vpop.f32.mrf.mxu0
    %v832 = vadd.f32 %v192, %v831
    %v833 = vpop.f32.mrf.mxu0
    %v834 = vadd.f32 %v192, %v833
    %835 = vdwg.mxu0
    %836 = vmatpush.bf16.msra.mxu0 %v555
    %837 = vmatpush.bf16.msra.mxu0 %v553
    %838 = vmatpush.bf16.msra.mxu0 %v551
    %839 = vmatpush.bf16.msra.mxu0 %v549
    %840 = vmatpush.bf16.msra.mxu0 %v547
    %841 = vmatpush.bf16.msra.mxu0 %v545
    %842 = vmatpush.bf16.msra.mxu0 %v543
    %843 = vmatpush.bf16.msra.mxu0 %v541
    %844 = vmatmul.bf16.gmra.mxu0 %v218
    %v845 = vpop.f32.mrf.mxu0
    %v846 = vadd.f32 %v832, %v845
    %v847 = vpop.f32.mrf.mxu0
    %v848 = vadd.f32 %v834, %v847
    %849 = vdwg.mxu0
    %850 = vmatpush.bf16.msra.mxu0 %v571
    %851 = vmatpush.bf16.msra.mxu0 %v569
    %852 = vmatpush.bf16.msra.mxu0 %v567
    %853 = vmatpush.bf16.msra.mxu0 %v565
    %854 = vmatpush.bf16.msra.mxu0 %v563
    %855 = vmatpush.bf16.msra.mxu0 %v561
    %856 = vmatpush.bf16.msra.mxu0 %v559
    %857 = vmatpush.bf16.msra.mxu0 %v557
    %858 = vmatmul.bf16.gmra.mxu0 %v219
    %v859 = vpop.f32.mrf.mxu0
    %v860 = vadd.f32 %v846, %v859
    %v861 = vpop.f32.mrf.mxu0
    %v862 = vadd.f32 %v848, %v861
    %863 = vdwg.mxu0
    %864 = vmatpush.bf16.msra.mxu0 %v587
    %865 = vmatpush.bf16.msra.mxu0 %v585
    %866 = vmatpush.bf16.msra.mxu0 %v583
    %867 = vmatpush.bf16.msra.mxu0 %v581
    %868 = vmatpush.bf16.msra.mxu0 %v579
    %869 = vmatpush.bf16.msra.mxu0 %v577
    %870 = vmatpush.bf16.msra.mxu0 %v575
    %871 = vmatpush.bf16.msra.mxu0 %v573
    %872 = vmatmul.bf16.gmra.mxu0 %v220
    %v873 = vpop.f32.mrf.mxu0
    %v874 = vadd.f32 %v860, %v873
    %v875 = vpop.f32.mrf.mxu0
    %v876 = vadd.f32 %v862, %v875
    %877 = vdwg.mxu0
    %878 = vmatpush.bf16.msra.mxu0 %v603
    %879 = vmatpush.bf16.msra.mxu0 %v601
    %880 = vmatpush.bf16.msra.mxu0 %v599
    %881 = vmatpush.bf16.msra.mxu0 %v597
    %882 = vmatpush.bf16.msra.mxu0 %v595
    %883 = vmatpush.bf16.msra.mxu0 %v593
    %884 = vmatpush.bf16.msra.mxu0 %v591
    %885 = vmatpush.bf16.msra.mxu0 %v589
    %886 = vmatmul.bf16.gmra.mxu0 %v221
    %v887 = vpop.f32.mrf.mxu0
    %v888 = vadd.f32 %v874, %v887
    %v889 = vpop.f32.mrf.mxu0
    %v890 = vadd.f32 %v876, %v889
    %891 = vdwg.mxu0
    %892 = vmatpush.bf16.msra.mxu0 %v619
    %893 = vmatpush.bf16.msra.mxu0 %v617
    %894 = vmatpush.bf16.msra.mxu0 %v615
    %895 = vmatpush.bf16.msra.mxu0 %v613
    %896 = vmatpush.bf16.msra.mxu0 %v611
    %897 = vmatpush.bf16.msra.mxu0 %v609
    %898 = vmatpush.bf16.msra.mxu0 %v607
    %899 = vmatpush.bf16.msra.mxu0 %v605
    %900 = vmatmul.bf16.gmra.mxu0 %v222
    %v901 = vpop.f32.mrf.mxu0
    %v902 = vadd.f32 %v888, %v901
    %v903 = vpop.f32.mrf.mxu0
    %v904 = vadd.f32 %v890, %v903
    %905 = vdwg.mxu0
    %906 = vmatpush.bf16.msra.mxu0 0
    %907 = vmatpush.bf16.msra.mxu0 0
    %908 = vmatpush.bf16.msra.mxu0 0
    %909 = vmatpush.bf16.msra.mxu0 0
    %910 = vmatpush.bf16.msra.mxu0 0
    %911 = vmatpush.bf16.msra.mxu0 0
    %912 = vmatpush.bf16.msra.mxu0 0
    %913 = vmatpush.bf16.msra.mxu0 %v621
    %914 = vmatmul.bf16.gmra.mxu0 %v722
    %v915 = vpop.f32.mrf.mxu0
    %v916 = vadd.f32 %v902, %v915
    %v917 = vpop.f32.mrf.mxu0
    %v918 = vadd.f32 %v904, %v917
    %919 = vdwg.mxu0
    %v920 = vmax.f32 %v818, 0.0
    %v921 = vmax.f32 %v916, 0.0
    %v922 = vmax.f32 %v820, 0.0
    %v923 = vmax.f32 %v918, 0.0
    %v924 = vpack.c.bf16 %v922, %v920
    %v925 = vpack.c.bf16 %v923, %v921
    %v926 = vld [vmem:[#allocation8] sm:$0xf]
    %v927 = vld [vmem:[#allocation8 + $0x4] sm:$0xf]
    %v928 = vld [vmem:[#allocation8 + $0x8] sm:$0xf]
    %v929 = vld [vmem:[#allocation8 + $0xc] sm:$0xf]
    %v930 = vld [vmem:[#allocation8 + $0x10] sm:$0xf]
    %v931 = vld [vmem:[#allocation8 + $0x14] sm:$0xf]
    %v932 = vld [vmem:[#allocation8 + $0x18] sm:$0xf]
    %v933 = vld [vmem:[#allocation8 + $0x1c] sm:$0xf]
    %v934 = vld [vmem:[#allocation8 + $0x20] sm:$0xf]
    %v935 = vld [vmem:[#allocation8 + $0x24] sm:$0xf]
    %v936 = vld [vmem:[#allocation8 + $0x28] sm:$0xf]
    %v937 = vld [vmem:[#allocation8 + $0x2c] sm:$0xf]
    %v938 = vld [vmem:[#allocation8 + $0x30] sm:$0xf]
    %v939 = vld [vmem:[#allocation8 + $0x34] sm:$0xf]
    %v940 = vld [vmem:[#allocation8 + $0x38] sm:$0xf]
    %v941 = vld [vmem:[#allocation8 + $0x3c] sm:$0xf]
    %v942 = vld [vmem:[#allocation8 + $0x40] sm:$0xf]
    %v943 = vld [vmem:[#allocation8 + $0x44] sm:$0xf]
    %v944 = vld [vmem:[#allocation8 + $0x48] sm:$0xf]
    %v945 = vld [vmem:[#allocation8 + $0x4c] sm:$0xf]
    %v946 = vld [vmem:[#allocation8 + $0x50] sm:$0xf]
    %v947 = vld [vmem:[#allocation8 + $0x54] sm:$0xf]
    %v948 = vld [vmem:[#allocation8 + $0x58] sm:$0xf]
    %v949 = vld [vmem:[#allocation8 + $0x5c] sm:$0xf]
    %v950 = vld [vmem:[#allocation8 + $0x60] sm:$0xf]
    %v951 = vld [vmem:[#allocation8 + $0x64] sm:$0xf]
    %v952 = vld [vmem:[#allocation8 + $0x68] sm:$0xf]
    %v953 = vld [vmem:[#allocation8 + $0x6c] sm:$0xf]
    %v954 = vld [vmem:[#allocation8 + $0x70] sm:$0xf]
    %v955 = vld [vmem:[#allocation8 + $0x74] sm:$0xf]
    %v956 = vld [vmem:[#allocation8 + $0x78] sm:$0xf]
    %v957 = vld [vmem:[#allocation8 + $0x7c] sm:$0xf]
    %v958 = vld [vmem:[%s4] sm:$0x1]
    %v960 = vperm.slane %v958, 0
    %v994 = vunpack.c.l.b16 %v926
    %v995 = vunpack.c.l.b16 %v927
    %v996 = vunpack.c.l.b16 %v928
    %v997 = vunpack.c.l.b16 %v929
    %v998 = vunpack.c.l.b16 %v930
    %v999 = vunpack.c.l.b16 %v931
    %v1000 = vunpack.c.l.b16 %v932
    %v1001 = vunpack.c.l.b16 %v933
    %v1002 = vunpack.c.l.b16 %v934
    %v1003 = vunpack.c.l.b16 %v935
    %v1004 = vunpack.c.l.b16 %v936
    %v1005 = vunpack.c.l.b16 %v937
    %v1006 = vunpack.c.l.b16 %v938
    %v1007 = vunpack.c.l.b16 %v939
    %v1008 = vunpack.c.l.b16 %v940
    %v1009 = vunpack.c.l.b16 %v941
    %v1010 = vunpack.c.l.b16 %v942
    %v1011 = vunpack.c.l.b16 %v943
    %v1012 = vunpack.c.l.b16 %v944
    %v1013 = vunpack.c.l.b16 %v945
    %v1014 = vunpack.c.l.b16 %v946
    %v1015 = vunpack.c.l.b16 %v947
    %v1016 = vunpack.c.l.b16 %v948
    %v1017 = vunpack.c.l.b16 %v949
    %v1018 = vunpack.c.l.b16 %v950
    %v1019 = vunpack.c.l.b16 %v951
    %v1020 = vunpack.c.l.b16 %v952
    %v1021 = vunpack.c.l.b16 %v953
    %v1022 = vunpack.c.l.b16 %v954
    %v1023 = vunpack.c.l.b16 %v955
    %v1024 = vunpack.c.l.b16 %v956
    %v1025 = vunpack.c.l.b16 %v957
    %v1026 = vpack.c.b16 %v995, %v994
    %v1027 = vpack.c.b16 %v997, %v996
    %v1028 = vpack.c.b16 %v999, %v998
    %v1029 = vpack.c.b16 %v1001, %v1000
    %v1030 = vpack.c.b16 %v1003, %v1002
    %v1031 = vpack.c.b16 %v1005, %v1004
    %v1032 = vpack.c.b16 %v1007, %v1006
    %v1033 = vpack.c.b16 %v1009, %v1008
    %v1034 = vpack.c.b16 %v1011, %v1010
    %v1035 = vpack.c.b16 %v1013, %v1012
    %v1036 = vpack.c.b16 %v1015, %v1014
    %v1037 = vpack.c.b16 %v1017, %v1016
    %v1038 = vpack.c.b16 %v1019, %v1018
    %v1039 = vpack.c.b16 %v1021, %v1020
    %v1040 = vpack.c.b16 %v1023, %v1022
    %v1041 = vpack.c.b16 %v1025, %v1024
    %1058 = vmatpush.bf16.msra.mxu0 %v1033
    %1059 = vmatpush.bf16.msra.mxu0 %v1032
    %1060 = vmatpush.bf16.msra.mxu0 %v1031
    %1061 = vmatpush.bf16.msra.mxu0 %v1030
    %1062 = vmatpush.bf16.msra.mxu0 %v1029
    %1063 = vmatpush.bf16.msra.mxu0 %v1028
    %1064 = vmatpush.bf16.msra.mxu0 %v1027
    %1065 = vmatpush.bf16.msra.mxu0 %v1026
    %1066 = vmatmul.bf16.gmra.mxu0 %v924
    %v1067 = vpop.f32.mrf.mxu0
    %v1068 = vadd.f32 %v960, %v1067
    %v1069 = vpop.f32.mrf.mxu0
    %v1070 = vadd.f32 %v960, %v1069
    %1071 = vdwg.mxu0
    %1072 = vmatpush.bf16.msra.mxu0 %v1041
    %1073 = vmatpush.bf16.msra.mxu0 %v1040
    %1074 = vmatpush.bf16.msra.mxu0 %v1039
    %1075 = vmatpush.bf16.msra.mxu0 %v1038
    %1076 = vmatpush.bf16.msra.mxu0 %v1037
    %1077 = vmatpush.bf16.msra.mxu0 %v1036
    %1078 = vmatpush.bf16.msra.mxu0 %v1035
    %1079 = vmatpush.bf16.msra.mxu0 %v1034
    %1080 = vmatmul.bf16.gmra.mxu0 %v925
    %v1081 = vpop.f32.mrf.mxu0
    %v1082 = vadd.f32 %v1068, %v1081
    %v1083 = vpop.f32.mrf.mxu0
    %v1084 = vadd.f32 %v1070, %v1083
    %1085 = vdwg.mxu0
    %1086 = vst [vmem:[#allocation10] sm:$0xff] %v1082
    %1087 = vst [vmem:[#allocation10 + $0x8] sm:$0xff] %v1084
    // Predicated region
    $region38: #{tpu_custom_call.1} parent=1 // pred_check
      _
    $region39: #{tpu_custom_call.1} parent=1 // pred_check_branch
      %1089 = sbr.rel (0) target = $region41
    $region40: #{tpu_custom_call.1} parent=1 // pred_region
      %1091 = vsyncadd [#allocation4], 0
      %s1092 = sshll.u32 [#allocation10], 4
      %s1093 = int_to_ptr.vmem [resolvable:$true] %s1092
      %s1094 = sshll.u32 %s5, 4
      %s1095 = int_to_ptr.hbm [resolvable:$true] %s1094
      %1100 = dma.vmem_to_hbm [thread:$0]  %s1093, 256, %s1095, [#allocation4], 128, 128, 8
    $region41: #{tpu_custom_call.1} parent=1 // pred_fallthru
      _
    // Predicated region
    $region42: #{tpu_custom_call.1} parent=1 // pred_check
      _
    $region43: #{tpu_custom_call.1} parent=1 // pred_check_branch
      %1102 = sbr.rel (0) target = $region45
    $region44: #{tpu_custom_call.1} parent=1 // pred_region
      %1104 = dma.done [#allocation4], 256
    $region45: #{tpu_custom_call.1} parent=1 // pred_fallthru
      _
    %1105 = vsyncpa [#allocation3], 1
    %1106 = vsyncpa [#allocation6], 1
    %1107 = vsyncpa [#allocation9], 1
    %1108 = vsyncpa [#allocation4], 1

</llo_original>
